<compile_context>
chip_gen: v6e
topology: v6e:2x2x1
jax: 0.10.0
libtpu: 0.0.40
codegen_flags: <defaults>
</compile_context>

<pallas_src>
import math

import jax
import jax.numpy as jnp
from jax.experimental import pallas as pl
from jax.experimental.pallas import tpu as pltpu

_HALF_LOG_2PI = 0.5 * math.log(2.0 * math.pi)


def _round_up(x, m):
    return ((x + m - 1) // m) * m


def _log_probs_kernel(x_ref, a_ref, b_ref, bias_ref, out_ref):
    # x_ref:    (TN, D)  tile of inputs
    # a_ref:    (D, Cp)  = (-0.5 * exp(-2*log_std)).T, class-padded to Cp lanes
    # b_ref:    (D, Cp)  = (mean * exp(-2*log_std)).T
    # bias_ref: (1, Cp)  per-class constant term
    # out_ref:  (TN, Cp) per-class summed gaussian log probs (lane-dense)
    x = x_ref[...]
    out_ref[...] = (
        jnp.dot(x * x, a_ref[...], preferred_element_type=jnp.float32)
        + jnp.dot(x, b_ref[...], preferred_element_type=jnp.float32)
        + bias_ref[...]
    )


def log_probs_per_class_pallas(x, class_means, class_log_stds, *, tile_n=256):
    """Per-class gaussian log-probs, summed over dims.  x: (N, D) -> (N, C).

    Grid is over batch tiles (marked "parallel"; keep >= 2 tiles on v7x so both
    TensorCores get work).  Class / dim parameters are held whole in VMEM — for
    this module they are tiny (C x D).
    """
    N, D = x.shape
    C, D2 = class_means.shape
    assert D == D2

    x = x.astype(jnp.float32)
    means = class_means.astype(jnp.float32)
    log_stds = class_log_stds.astype(jnp.float32)

    # --- tiny precompute in plain JAX (expanded-square reformulation) ---
    inv_var = jnp.exp(-2.0 * log_stds)                              # (C, D)
    a_mat = (-0.5 * inv_var).T                                      # (D, C)
    b_mat = (means * inv_var).T                                     # (D, C)
    bias = (
        jnp.sum(-0.5 * means * means * inv_var - log_stds, axis=-1)
        - D * _HALF_LOG_2PI
    )                                                               # (C,)

    # --- pad class axis to a lane-dense multiple of 128, batch to tile_n ---
    c_pad = _round_up(max(C, 1), 128)
    n_pad = _round_up(max(N, 1), tile_n)

    a_mat = jnp.pad(a_mat, ((0, 0), (0, c_pad - C)))
    b_mat = jnp.pad(b_mat, ((0, 0), (0, c_pad - C)))
    bias = jnp.pad(bias, (0, c_pad - C)).reshape(1, c_pad)
    x_p = jnp.pad(x, ((0, n_pad - N), (0, 0)))

    grid = (n_pad // tile_n,)

    # Explicit VMEM budget (double-buffered inputs/outputs + resident params),
    # with headroom; stays far below the v7x 64 MiB physical limit.
    vmem_bytes = (
        2 * tile_n * D * 4          # x tile (double-buffered)
        + 2 * 2 * D * c_pad * 4     # A, B
        + 2 * 1 * c_pad * 4         # bias
        + 2 * tile_n * c_pad * 4    # output tile
    )
    vmem_limit = min(max(4 * vmem_bytes, 4 << 20), 48 << 20)

    # TODO(synk): for very large C or D, add class/dim grid axes (with a VMEM
    # accumulator + pl.when on an "arbitrary" reduction axis) instead of holding
    # full (D, C_pad) operands resident; unnecessary at module-typical sizes.
    out_padded = pl.pallas_call(
        _log_probs_kernel,
        out_shape=jax.ShapeDtypeStruct((n_pad, c_pad), jnp.float32),
        grid_spec=pltpu.PrefetchScalarGridSpec(
            num_scalar_prefetch=0,
            grid=grid,
            in_specs=[
                pl.BlockSpec((tile_n, D), lambda i: (i, 0)),    # x tile
                pl.BlockSpec((D, c_pad), lambda i: (0, 0)),     # A (resident)
                pl.BlockSpec((D, c_pad), lambda i: (0, 0)),     # B (resident)
                pl.BlockSpec((1, c_pad), lambda i: (0, 0)),     # bias (resident)
            ],
            out_specs=pl.BlockSpec((tile_n, c_pad), lambda i: (i, 0)),
        ),
        compiler_params=pltpu.CompilerParams(
            dimension_semantics=("parallel",),
            vmem_limit_bytes=vmem_limit,
        ),
    )(x_p, a_mat, b_mat, bias)

    return out_padded[:N, :C]


def nclass_independent_dist_forward(x, class_means, class_log_stds, y=None):
    """Mirror of NClassIndependentDist.forward (sum_dims=True path).

    Returns (x, logdet). If y (int labels, shape (N,)) is given, gathers the
    per-sample log-prob of that class, giving logdet shape (N,).
    """
    logdet = log_probs_per_class_pallas(x, class_means, class_log_stds)
    if y is not None:
        # glue: gather along class axis (cheap, done in plain JAX)
        logdet = jnp.take_along_axis(logdet, y[:, None], axis=1)[:, 0]
    return x, logdet


def _reference_log_probs(x, means, log_stds):
    diff = x[:, None, :] - means[None, :, :]
    z = diff * jnp.exp(-log_stds)[None, :, :]
    lp = -0.5 * z * z - log_stds[None, :, :] - _HALF_LOG_2PI
    return jnp.sum(lp, axis=-1)


if __name__ == "__main__":
    key = jax.random.PRNGKey(0)
    kx, km, ks = jax.random.split(key, 3)

    N, C, D = 8, 4, 32  # batch, n_classes, n_dims

    x = jax.random.normal(kx, (N, D), dtype=jnp.float32)
    # Deterministic "parameters" (module init is zeros; use small random values
    # so the test is non-degenerate, seeded for reproducibility).
    class_means = 0.1 * jax.random.normal(km, (C, D), dtype=jnp.float32)
    class_log_stds = 0.05 * jax.random.normal(ks, (C, D), dtype=jnp.float32)

    x_out, logdet = nclass_independent_dist_forward(x, class_means, class_log_stds)
    jax.block_until_ready(logdet)

    ref = _reference_log_probs(x, class_means, class_log_stds)
    assert logdet.shape == (N, C)
    # Expanded-square form loses a little precision vs the (x-mu) form, so use
    # a slightly looser tolerance than the original elementwise kernel.
    assert jnp.allclose(logdet, ref, atol=1e-3, rtol=1e-3), (logdet, ref)
    assert jnp.array_equal(x_out, x)

    # labeled path (gather) — glue only
    y = jnp.array([0, 1, 2, 3, 0, 1, 2, 3], dtype=jnp.int32)
    _, logdet_y = nclass_independent_dist_forward(x, class_means, class_log_stds, y=y)
    jax.block_until_ready(logdet_y)
    assert logdet_y.shape == (N,)
    assert jnp.allclose(logdet_y, ref[jnp.arange(N), y], atol=1e-3, rtol=1e-3)

    print("KERNEL_OK")
</pallas_src>

<mosaic_0001>
module attributes {stable_mosaic.version = 11 : i64} {
  func.func @_log_probs_kernel(%arg0: i32, %arg1: memref<256x32xf32, #tpu.memory_space<vmem>>, %arg2: memref<32x128xf32, #tpu.memory_space<vmem>>, %arg3: memref<32x128xf32, #tpu.memory_space<vmem>>, %arg4: memref<1x128xf32, #tpu.memory_space<vmem>>, %arg5: memref<256x128xf32, #tpu.memory_space<vmem>>) attributes {dimension_semantics = [#tpu.dimension_semantics<parallel>], iteration_bounds = array<i64: 1>, scalar_prefetch = 0 : i64, scratch_operands = 0 : i64, tpu.core_type = #tpu.core_type<tc>, window_params = [{transform_indices = @transform_0, window_bounds = array<i64: 256, 32>}, {pipeline_mode = #tpu.pipeline_mode<synchronous>, transform_indices = @transform_1, window_bounds = array<i64: 32, 128>}, {pipeline_mode = #tpu.pipeline_mode<synchronous>, transform_indices = @transform_2, window_bounds = array<i64: 32, 128>}, {pipeline_mode = #tpu.pipeline_mode<synchronous>, transform_indices = @transform_3, window_bounds = array<i64: 1, 128>}, {transform_indices = @transform_4, window_bounds = array<i64: 256, 128>}]} {
    %c0 = arith.constant 0 : index
    %c0_0 = arith.constant 0 : index
    %0 = vector.load %arg1[%c0, %c0_0] : memref<256x32xf32, #tpu.memory_space<vmem>>, vector<256x32xf32>
    %1 = arith.mulf %0, %0 : vector<256x32xf32>
    %c0_1 = arith.constant 0 : index
    %c0_2 = arith.constant 0 : index
    %2 = vector.load %arg2[%c0_1, %c0_2] : memref<32x128xf32, #tpu.memory_space<vmem>>, vector<32x128xf32>
    %cst = arith.constant dense<0.000000e+00> : vector<256x128xf32>
    %3 = tpu.matmul %1, %2, %cst {dimension_numbers = #tpu.dot_dimension_numbers<[1], [0], [0], [1], [0, 0, 1, 1], [], []>} : vector<256x32xf32>, vector<32x128xf32>, vector<256x128xf32> -> vector<256x128xf32>
    %c0_3 = arith.constant 0 : index
    %c0_4 = arith.constant 0 : index
    %4 = vector.load %arg3[%c0_3, %c0_4] : memref<32x128xf32, #tpu.memory_space<vmem>>, vector<32x128xf32>
    %cst_5 = arith.constant dense<0.000000e+00> : vector<256x128xf32>
    %5 = tpu.matmul %0, %4, %cst_5 {dimension_numbers = #tpu.dot_dimension_numbers<[1], [0], [0], [1], [0, 0, 1, 1], [], []>} : vector<256x32xf32>, vector<32x128xf32>, vector<256x128xf32> -> vector<256x128xf32>
    %6 = arith.addf %3, %5 : vector<256x128xf32>
    %c0_6 = arith.constant 0 : index
    %c0_7 = arith.constant 0 : index
    %7 = vector.load %arg4[%c0_6, %c0_7] : memref<1x128xf32, #tpu.memory_space<vmem>>, vector<1x128xf32>
    %8 = vector.broadcast %7 : vector<1x128xf32> to vector<256x128xf32>
    %9 = arith.addf %6, %8 : vector<256x128xf32>
    %c0_8 = arith.constant 0 : index
    %c0_9 = arith.constant 0 : index
    %10 = vector.load %arg5[%c0_8, %c0_9] : memref<256x128xf32, #tpu.memory_space<vmem>>, vector<256x128xf32>
    tpu.vector_store %arg5[%c0_8, %c0_9], %9 {strides = array<i32>} : memref<256x128xf32, #tpu.memory_space<vmem>>, vector<256x128xf32>,
    return
  }
  func.func @transform_0(%arg0: i32) -> (i32, i32) {
    %c0_i32 = arith.constant 0 : i32
    %c0_i32_0 = arith.constant 0 : i32
    return %arg0, %c0_i32 : i32, i32
  }
  func.func @transform_1(%arg0: i32) -> (i32, i32) {
    %c0_i32 = arith.constant 0 : i32
    %c0_i32_0 = arith.constant 0 : i32
    %c0_i32_1 = arith.constant 0 : i32
    return %c0_i32, %c0_i32_0 : i32, i32
  }
  func.func @transform_2(%arg0: i32) -> (i32, i32) {
    %c0_i32 = arith.constant 0 : i32
    %c0_i32_0 = arith.constant 0 : i32
    %c0_i32_1 = arith.constant 0 : i32
    return %c0_i32, %c0_i32_0 : i32, i32
  }
  func.func @transform_3(%arg0: i32) -> (i32, i32) {
    %c0_i32 = arith.constant 0 : i32
    %c0_i32_0 = arith.constant 0 : i32
    %c0_i32_1 = arith.constant 0 : i32
    return %c0_i32, %c0_i32_0 : i32, i32
  }
  func.func @transform_4(%arg0: i32) -> (i32, i32) {
    %c0_i32 = arith.constant 0 : i32
    %c0_i32_0 = arith.constant 0 : i32
    return %arg0, %c0_i32 : i32, i32
  }
}

</mosaic_0001>

<llo_original>
// kernel: tpu_custom_call.1
$region0: #{tpu_custom_call.1}
  #allocation0 [shape = 'u32[]', space=smem, size = 0x4, offset = 0x4, fixed_abs, tag = 'smem constant byte address 0x4 - core index']
  #allocation1 [shape = 'u32[144,128]{1,0:T(1,128)}', space=vmem, size = 0x12000, scoped, tag = 'internal scratch']
  %s0 = inlined_call_operand.vmem [shape: f32[256,32], index: 0, kind: input, shape index: {}]
  %s1 = inlined_call_operand.vmem [shape: f32[32,128], index: 1, kind: input, shape index: {}]
  %s2 = inlined_call_operand.vmem [shape: f32[32,128], index: 2, kind: input, shape index: {}]
  %s3 = inlined_call_operand.vmem [shape: f32[1,128], index: 3, kind: input, shape index: {}]
  %s4 = inlined_call_operand.hbm [shape: f32[256,128], index: 4, kind: output, shape index: {}]
  %s5 = sld [smem:[#allocation0]]
  $region26: #{tpu_custom_call.1} parent=0
    _
  %s7 = ssub.s32 1, %s5
  %s8 = scalar_select 0, %s7, %s5
  $region1: #{tpu_custom_call.1} parent=0
    #allocation2 [shape = 'u8[131072]{0}', space=vmem, size = 0x20000, scoped, tag = 'output window, operand 0, single buffered']
    #allocation3 [shape = 's32[1]{0}', space=sflag, size = 0x4, scoped, tag = 'scoped memory for tpu_custom_call.1']
    %9 = vsyncpa [#allocation3], 0
    // Predicated region
    $region2: #{tpu_custom_call.1} parent=1 // pred_check
      _
    $region3: #{tpu_custom_call.1} parent=1 // pred_check_branch
      %11 = sbr.rel (0) target = $region5
    $region4: #{tpu_custom_call.1} parent=1 // pred_region
      _
    $region5: #{tpu_custom_call.1} parent=1 // pred_fallthru
      _
    // Predicated region
    $region6: #{tpu_custom_call.1} parent=1 // pred_check
      _
    $region7: #{tpu_custom_call.1} parent=1 // pred_check_branch
      %13 = sbr.rel (0) target = $region9
    $region8: #{tpu_custom_call.1} parent=1 // pred_region
      _
    $region9: #{tpu_custom_call.1} parent=1 // pred_fallthru
      _
    // Predicated region
    $region10: #{tpu_custom_call.1} parent=1 // pred_check
      _
    $region11: #{tpu_custom_call.1} parent=1 // pred_check_branch
      %15 = sbr.rel (0) target = $region13
    $region12: #{tpu_custom_call.1} parent=1 // pred_region
      _
    $region13: #{tpu_custom_call.1} parent=1 // pred_fallthru
      _
    // Predicated region
    $region14: #{tpu_custom_call.1} parent=1 // pred_check
      _
    $region15: #{tpu_custom_call.1} parent=1 // pred_check_branch
      %17 = sbr.rel (0) target = $region17
    $region16: #{tpu_custom_call.1} parent=1 // pred_region
      _
    $region17: #{tpu_custom_call.1} parent=1 // pred_fallthru
      _
    %v18 = vld [vmem:[%s0] sm:$0xff]
    %v19 = vld [vmem:[%s0 + $0x8] sm:$0xff]
    %v20 = vld [vmem:[%s0 + $0x10] sm:$0xff]
    %v21 = vld [vmem:[%s0 + $0x18] sm:$0xff]
    %v22 = vld [vmem:[%s0 + $0x20] sm:$0xff]
    %v23 = vld [vmem:[%s0 + $0x28] sm:$0xff]
    %v24 = vld [vmem:[%s0 + $0x30] sm:$0xff]
    %v25 = vld [vmem:[%s0 + $0x38] sm:$0xff]
    %v26 = vld [vmem:[%s0 + $0x40] sm:$0xff]
    %v27 = vld [vmem:[%s0 + $0x48] sm:$0xff]
    %v28 = vld [vmem:[%s0 + $0x50] sm:$0xff]
    %v29 = vld [vmem:[%s0 + $0x58] sm:$0xff]
    %v30 = vld [vmem:[%s0 + $0x60] sm:$0xff]
    %v31 = vld [vmem:[%s0 + $0x68] sm:$0xff]
    %v32 = vld [vmem:[%s0 + $0x70] sm:$0xff]
    %v33 = vld [vmem:[%s0 + $0x78] sm:$0xff]
    %v34 = vld [vmem:[%s0 + $0x80] sm:$0xff]
    %v35 = vld [vmem:[%s0 + $0x88] sm:$0xff]
    %v36 = vld [vmem:[%s0 + $0x90] sm:$0xff]
    %v37 = vld [vmem:[%s0 + $0x98] sm:$0xff]
    %v38 = vld [vmem:[%s0 + $0xa0] sm:$0xff]
    %v39 = vld [vmem:[%s0 + $0xa8] sm:$0xff]
    %v40 = vld [vmem:[%s0 + $0xb0] sm:$0xff]
    %v41 = vld [vmem:[%s0 + $0xb8] sm:$0xff]
    %v42 = vld [vmem:[%s0 + $0xc0] sm:$0xff]
    %v43 = vld [vmem:[%s0 + $0xc8] sm:$0xff]
    %v44 = vld [vmem:[%s0 + $0xd0] sm:$0xff]
    %v45 = vld [vmem:[%s0 + $0xd8] sm:$0xff]
    %v46 = vld [vmem:[%s0 + $0xe0] sm:$0xff]
    %v47 = vld [vmem:[%s0 + $0xe8] sm:$0xff]
    %v48 = vld [vmem:[%s0 + $0xf0] sm:$0xff]
    %v49 = vld [vmem:[%s0 + $0xf8] sm:$0xff]
    %v50 = vmul.f32 %v18, %v18
    %v51 = vmul.f32 %v19, %v19
    %v52 = vmul.f32 %v20, %v20
    %v53 = vmul.f32 %v21, %v21
    %v54 = vmul.f32 %v22, %v22
    %v55 = vmul.f32 %v23, %v23
    %v56 = vmul.f32 %v24, %v24
    %v57 = vmul.f32 %v25, %v25
    %v58 = vmul.f32 %v26, %v26
    %v59 = vmul.f32 %v27, %v27
    %v60 = vmul.f32 %v28, %v28
    %v61 = vmul.f32 %v29, %v29
    %v62 = vmul.f32 %v30, %v30
    %v63 = vmul.f32 %v31, %v31
    %v64 = vmul.f32 %v32, %v32
    %v65 = vmul.f32 %v33, %v33
    %v66 = vmul.f32 %v34, %v34
    %v67 = vmul.f32 %v35, %v35
    %v68 = vmul.f32 %v36, %v36
    %v69 = vmul.f32 %v37, %v37
    %v70 = vmul.f32 %v38, %v38
    %v71 = vmul.f32 %v39, %v39
    %v72 = vmul.f32 %v40, %v40
    %v73 = vmul.f32 %v41, %v41
    %v74 = vmul.f32 %v42, %v42
    %v75 = vmul.f32 %v43, %v43
    %v76 = vmul.f32 %v44, %v44
    %v77 = vmul.f32 %v45, %v45
    %v78 = vmul.f32 %v46, %v46
    %v79 = vmul.f32 %v47, %v47
    %v80 = vmul.f32 %v48, %v48
    %v81 = vmul.f32 %v49, %v49
    %v82 = vld [vmem:[%s1] sm:$0xff]
    %v83 = vld [vmem:[%s1 + $0x8] sm:$0xff]
    %v84 = vld [vmem:[%s1 + $0x10] sm:$0xff]
    %v85 = vld [vmem:[%s1 + $0x18] sm:$0xff]
    %v86 = vld [vmem:[%s2] sm:$0xff]
    %v87 = vld [vmem:[%s2 + $0x8] sm:$0xff]
    %v88 = vld [vmem:[%s2 + $0x10] sm:$0xff]
    %v89 = vld [vmem:[%s2 + $0x18] sm:$0xff]
    %vm90 = vcmask 261120
    %v92 = vsel %vm90, %v18, 0
    %v95 = vsel %vm90, %v19, 0
    %v98 = vsel %vm90, %v20, 0
    %v101 = vsel %vm90, %v21, 0
    %v104 = vsel %vm90, %v22, 0
    %v107 = vsel %vm90, %v23, 0
    %v110 = vsel %vm90, %v24, 0
    %v113 = vsel %vm90, %v25, 0
    %v116 = vsel %vm90, %v26, 0
    %v119 = vsel %vm90, %v27, 0
    %v122 = vsel %vm90, %v28, 0
    %v125 = vsel %vm90, %v29, 0
    %v128 = vsel %vm90, %v30, 0
    %v131 = vsel %vm90, %v31, 0
    %v134 = vsel %vm90, %v32, 0
    %v137 = vsel %vm90, %v33, 0
    %v140 = vsel %vm90, %v34, 0
    %v143 = vsel %vm90, %v35, 0
    %v146 = vsel %vm90, %v36, 0
    %v149 = vsel %vm90, %v37, 0
    %v152 = vsel %vm90, %v38, 0
    %v155 = vsel %vm90, %v39, 0
    %v158 = vsel %vm90, %v40, 0
    %v161 = vsel %vm90, %v41, 0
    %v164 = vsel %vm90, %v42, 0
    %v167 = vsel %vm90, %v43, 0
    %v170 = vsel %vm90, %v44, 0
    %v173 = vsel %vm90, %v45, 0
    %v176 = vsel %vm90, %v46, 0
    %v179 = vsel %vm90, %v47, 0
    %v182 = vsel %vm90, %v48, 0
    %v185 = vsel %vm90, %v49, 0
    %187 = vmatprep.subr.mxu0 0.0
    %188 = vmatpush1.msra.mxu0 0.0
    %189 = vmatprep.subr.mxu0 0.0
    %190 = vmatpush1.msra.mxu0 0.0
    %191 = vmatprep.subr.mxu0 0.0
    %192 = vmatpush1.msra.mxu0 0.0
    %193 = vmatprep.subr.mxu0 0.0
    %194 = vmatpush1.msra.mxu0 0.0
    %195 = vmatprep.subr.mxu0 0.0
    %196 = vmatpush1.msra.mxu0 0.0
    %197 = vmatprep.subr.mxu0 0.0
    %198 = vmatpush1.msra.mxu0 0.0
    %199 = vmatprep.subr.mxu0 0.0
    %200 = vmatpush1.msra.mxu0 0.0
    %201 = vmatprep.subr.mxu0 0.0
    %202 = vmatpush1.msra.mxu0 0.0
    %203 = vmatprep.subr.mxu0 0.0
    %204 = vmatpush1.msra.mxu0 0.0
    %205 = vmatprep.subr.mxu0 0.0
    %206 = vmatpush1.msra.mxu0 0.0
    %207 = vmatprep.subr.mxu0 0.0
    %208 = vmatpush1.msra.mxu0 0.0
    %209 = vmatprep.subr.mxu0 0.0
    %210 = vmatpush1.msra.mxu0 0.0
    %211 = vmatprep.subr.mxu0 0.0
    %212 = vmatpush1.msra.mxu0 %v89
    %213 = vmatprep.subr.mxu0 0.0
    %214 = vmatpush1.msra.mxu0 %v88
    %215 = vmatprep.subr.mxu0 0.0
    %216 = vmatpush1.msra.mxu0 %v87
    %217 = vmatprep.subr.mxu0 0.0
    %218 = vmatpush1.msra.mxu0 %v86
    %219 = vmatprep.subr.mxu0 0.0
    %220 = vmatpush2.msra.mxu0 0.0
    %221 = vmatprep.subr.mxu0 0.0
    %222 = vmatpush2.msra.mxu0 0.0
    %223 = vmatprep.subr.mxu0 0.0
    %224 = vmatpush2.msra.mxu0 0.0
    %225 = vmatprep.subr.mxu0 0.0
    %226 = vmatpush2.msra.mxu0 0.0
    %227 = vmatprep.subr.mxu0 0.0
    %228 = vmatpush2.msra.mxu0 0.0
    %229 = vmatprep.subr.mxu0 0.0
    %230 = vmatpush2.msra.mxu0 0.0
    %231 = vmatprep.subr.mxu0 0.0
    %232 = vmatpush2.msra.mxu0 0.0
    %233 = vmatprep.subr.mxu0 0.0
    %234 = vmatpush2.msra.mxu0 0.0
    %235 = vmatprep.subr.mxu0 0.0
    %236 = vmatpush2.msra.mxu0 0.0
    %237 = vmatprep.subr.mxu0 0.0
    %238 = vmatpush2.msra.mxu0 0.0
    %239 = vmatprep.subr.mxu0 0.0
    %240 = vmatpush2.msra.mxu0 0.0
    %241 = vmatprep.subr.mxu0 0.0
    %242 = vmatpush2.msra.mxu0 0.0
    %243 = vmatprep.subr.mxu0 0.0
    %244 = vmatpush2.msra.mxu0 0.0
    %245 = vmatprep.subr.mxu0 0.0
    %246 = vmatpush2.msra.mxu0 0.0
    %247 = vmatprep.subr.mxu0 0.0
    %248 = vmatpush2.msra.mxu0 0.0
    %249 = vmatprep.subr.mxu0 0.0
    %250 = vmatpush2.msra.mxu0 0.0
    %251 = vmatprep.mubr.f32.mxu0 0.0
    %252 = vmatmul.mubr.f32.gmra.mxu0 %v92
    %v253 = vpop.f32.mrf.mxu0
    %v254 = vadd.f32 0.0, %v253
    %v255 = vpop.f32.mrf.mxu0
    %256 = vmatprep.mubr.f32.mxu0 0.0
    %257 = vmatmul.mubr.f32.gmra.mxu0 %v95
    %v258 = vpop.f32.mrf.mxu0
    %v259 = vadd.f32 0.0, %v258
    %v260 = vpop.f32.mrf.mxu0
    %261 = vmatprep.mubr.f32.mxu0 0.0
    %262 = vmatmul.mubr.f32.gmra.mxu0 %v98
    %v263 = vpop.f32.mrf.mxu0
    %v264 = vadd.f32 0.0, %v263
    %v265 = vpop.f32.mrf.mxu0
    %266 = vmatprep.mubr.f32.mxu0 0.0
    %267 = vmatmul.mubr.f32.gmra.mxu0 %v101
    %v268 = vpop.f32.mrf.mxu0
    %v269 = vadd.f32 0.0, %v268
    %v270 = vpop.f32.mrf.mxu0
    %271 = vmatprep.mubr.f32.mxu0 0.0
    %272 = vmatmul.mubr.f32.gmra.mxu0 %v104
    %v273 = vpop.f32.mrf.mxu0
    %v274 = vadd.f32 0.0, %v273
    %v275 = vpop.f32.mrf.mxu0
    %276 = vmatprep.mubr.f32.mxu0 0.0
    %277 = vmatmul.mubr.f32.gmra.mxu0 %v107
    %v278 = vpop.f32.mrf.mxu0
    %v279 = vadd.f32 0.0, %v278
    %v280 = vpop.f32.mrf.mxu0
    %281 = vmatprep.mubr.f32.mxu0 0.0
    %282 = vmatmul.mubr.f32.gmra.mxu0 %v110
    %v283 = vpop.f32.mrf.mxu0
    %v284 = vadd.f32 0.0, %v283
    %v285 = vpop.f32.mrf.mxu0
    %286 = vmatprep.mubr.f32.mxu0 0.0
    %287 = vmatmul.mubr.f32.gmra.mxu0 %v113
    %v288 = vpop.f32.mrf.mxu0
    %v289 = vadd.f32 0.0, %v288
    %v290 = vpop.f32.mrf.mxu0
    %291 = vmatprep.mubr.f32.mxu0 0.0
    %292 = vmatmul.mubr.f32.gmra.mxu0 %v116
    %v293 = vpop.f32.mrf.mxu0
    %v294 = vadd.f32 0.0, %v293
    %v295 = vpop.f32.mrf.mxu0
    %296 = vmatprep.mubr.f32.mxu0 0.0
    %297 = vmatmul.mubr.f32.gmra.mxu0 %v119
    %v298 = vpop.f32.mrf.mxu0
    %v299 = vadd.f32 0.0, %v298
    %v300 = vpop.f32.mrf.mxu0
    %301 = vmatprep.mubr.f32.mxu0 0.0
    %302 = vmatmul.mubr.f32.gmra.mxu0 %v122
    %v303 = vpop.f32.mrf.mxu0
    %v304 = vadd.f32 0.0, %v303
    %v305 = vpop.f32.mrf.mxu0
    %306 = vmatprep.mubr.f32.mxu0 0.0
    %307 = vmatmul.mubr.f32.gmra.mxu0 %v125
    %v308 = vpop.f32.mrf.mxu0
    %v309 = vadd.f32 0.0, %v308
    %v310 = vpop.f32.mrf.mxu0
    %311 = vmatprep.mubr.f32.mxu0 0.0
    %312 = vmatmul.mubr.f32.gmra.mxu0 %v128
    %v313 = vpop.f32.mrf.mxu0
    %v314 = vadd.f32 0.0, %v313
    %v315 = vpop.f32.mrf.mxu0
    %316 = vmatprep.mubr.f32.mxu0 0.0
    %317 = vmatmul.mubr.f32.gmra.mxu0 %v131
    %v318 = vpop.f32.mrf.mxu0
    %v319 = vadd.f32 0.0, %v318
    %v320 = vpop.f32.mrf.mxu0
    %321 = vmatprep.mubr.f32.mxu0 0.0
    %322 = vmatmul.mubr.f32.gmra.mxu0 %v134
    %v323 = vpop.f32.mrf.mxu0
    %v324 = vadd.f32 0.0, %v323
    %v325 = vpop.f32.mrf.mxu0
    %326 = vmatprep.mubr.f32.mxu0 0.0
    %327 = vmatmul.mubr.f32.gmra.mxu0 %v137
    %v328 = vpop.f32.mrf.mxu0
    %v329 = vadd.f32 0.0, %v328
    %v330 = vpop.f32.mrf.mxu0
    %331 = vmatprep.mubr.f32.mxu0 0.0
    %332 = vmatmul.mubr.f32.gmra.mxu0 %v140
    %v333 = vpop.f32.mrf.mxu0
    %v334 = vadd.f32 0.0, %v333
    %v335 = vpop.f32.mrf.mxu0
    %336 = vmatprep.mubr.f32.mxu0 0.0
    %337 = vmatmul.mubr.f32.gmra.mxu0 %v143
    %v338 = vpop.f32.mrf.mxu0
    %v339 = vadd.f32 0.0, %v338
    %v340 = vpop.f32.mrf.mxu0
    %341 = vmatprep.mubr.f32.mxu0 0.0
    %342 = vmatmul.mubr.f32.gmra.mxu0 %v146
    %v343 = vpop.f32.mrf.mxu0
    %v344 = vadd.f32 0.0, %v343
    %v345 = vpop.f32.mrf.mxu0
    %346 = vmatprep.mubr.f32.mxu0 0.0
    %347 = vmatmul.mubr.f32.gmra.mxu0 %v149
    %v348 = vpop.f32.mrf.mxu0
    %v349 = vadd.f32 0.0, %v348
    %v350 = vpop.f32.mrf.mxu0
    %351 = vmatprep.mubr.f32.mxu0 0.0
    %352 = vmatmul.mubr.f32.gmra.mxu0 %v152
    %v353 = vpop.f32.mrf.mxu0
    %v354 = vadd.f32 0.0, %v353
    %v355 = vpop.f32.mrf.mxu0
    %356 = vmatprep.mubr.f32.mxu0 0.0
    %357 = vmatmul.mubr.f32.gmra.mxu0 %v155
    %v358 = vpop.f32.mrf.mxu0
    %v359 = vadd.f32 0.0, %v358
    %v360 = vpop.f32.mrf.mxu0
    %361 = vmatprep.mubr.f32.mxu0 0.0
    %362 = vmatmul.mubr.f32.gmra.mxu0 %v158
    %v363 = vpop.f32.mrf.mxu0
    %v364 = vadd.f32 0.0, %v363
    %v365 = vpop.f32.mrf.mxu0
    %366 = vmatprep.mubr.f32.mxu0 0.0
    %367 = vmatmul.mubr.f32.gmra.mxu0 %v161
    %v368 = vpop.f32.mrf.mxu0
    %v369 = vadd.f32 0.0, %v368
    %v370 = vpop.f32.mrf.mxu0
    %371 = vmatprep.mubr.f32.mxu0 0.0
    %372 = vmatmul.mubr.f32.gmra.mxu0 %v164
    %v373 = vpop.f32.mrf.mxu0
    %v374 = vadd.f32 0.0, %v373
    %v375 = vpop.f32.mrf.mxu0
    %376 = vmatprep.mubr.f32.mxu0 0.0
    %377 = vmatmul.mubr.f32.gmra.mxu0 %v167
    %v378 = vpop.f32.mrf.mxu0
    %v379 = vadd.f32 0.0, %v378
    %v380 = vpop.f32.mrf.mxu0
    %381 = vmatprep.mubr.f32.mxu0 0.0
    %382 = vmatmul.mubr.f32.gmra.mxu0 %v170
    %v383 = vpop.f32.mrf.mxu0
    %v384 = vadd.f32 0.0, %v383
    %v385 = vpop.f32.mrf.mxu0
    %386 = vmatprep.mubr.f32.mxu0 0.0
    %387 = vmatmul.mubr.f32.gmra.mxu0 %v173
    %v388 = vpop.f32.mrf.mxu0
    %v389 = vadd.f32 0.0, %v388
    %v390 = vpop.f32.mrf.mxu0
    %391 = vmatprep.mubr.f32.mxu0 0.0
    %392 = vmatmul.mubr.f32.gmra.mxu0 %v176
    %v393 = vpop.f32.mrf.mxu0
    %v394 = vadd.f32 0.0, %v393
    %v395 = vpop.f32.mrf.mxu0
    %396 = vmatprep.mubr.f32.mxu0 0.0
    %397 = vmatmul.mubr.f32.gmra.mxu0 %v179
    %v398 = vpop.f32.mrf.mxu0
    %v399 = vadd.f32 0.0, %v398
    %v400 = vpop.f32.mrf.mxu0
    %401 = vmatprep.mubr.f32.mxu0 0.0
    %402 = vmatmul.mubr.f32.gmra.mxu0 %v182
    %v403 = vpop.f32.mrf.mxu0
    %v404 = vadd.f32 0.0, %v403
    %v405 = vpop.f32.mrf.mxu0
    %406 = vmatprep.mubr.f32.mxu0 0.0
    %407 = vmatmul.mubr.f32.gmra.mxu0 %v185
    %v408 = vpop.f32.mrf.mxu0
    %v409 = vadd.f32 0.0, %v408
    %v410 = vpop.f32.mrf.mxu0
    %411 = vdwg.mxu0
    %v413 = vsel %vm90, %v50, 0
    %v416 = vsel %vm90, %v51, 0
    %v419 = vsel %vm90, %v52, 0
    %v422 = vsel %vm90, %v53, 0
    %v425 = vsel %vm90, %v54, 0
    %v428 = vsel %vm90, %v55, 0
    %v431 = vsel %vm90, %v56, 0
    %v434 = vsel %vm90, %v57, 0
    %v437 = vsel %vm90, %v58, 0
    %v440 = vsel %vm90, %v59, 0
    %v443 = vsel %vm90, %v60, 0
    %v446 = vsel %vm90, %v61, 0
    %v449 = vsel %vm90, %v62, 0
    %v452 = vsel %vm90, %v63, 0
    %v455 = vsel %vm90, %v64, 0
    %v458 = vsel %vm90, %v65, 0
    %v461 = vsel %vm90, %v66, 0
    %v464 = vsel %vm90, %v67, 0
    %v467 = vsel %vm90, %v68, 0
    %v470 = vsel %vm90, %v69, 0
    %v473 = vsel %vm90, %v70, 0
    %v476 = vsel %vm90, %v71, 0
    %v479 = vsel %vm90, %v72, 0
    %v482 = vsel %vm90, %v73, 0
    %v485 = vsel %vm90, %v74, 0
    %v488 = vsel %vm90, %v75, 0
    %v491 = vsel %vm90, %v76, 0
    %v494 = vsel %vm90, %v77, 0
    %v497 = vsel %vm90, %v78, 0
    %v500 = vsel %vm90, %v79, 0
    %v503 = vsel %vm90, %v80, 0
    %v506 = vsel %vm90, %v81, 0
    %508 = vmatprep.subr.mxu0 0.0
    %509 = vmatpush1.msra.mxu0 0.0
    %510 = vmatprep.subr.mxu0 0.0
    %511 = vmatpush1.msra.mxu0 0.0
    %512 = vmatprep.subr.mxu0 0.0
    %513 = vmatpush1.msra.mxu0 0.0
    %514 = vmatprep.subr.mxu0 0.0
    %515 = vmatpush1.msra.mxu0 0.0
    %516 = vmatprep.subr.mxu0 0.0
    %517 = vmatpush1.msra.mxu0 0.0
    %518 = vmatprep.subr.mxu0 0.0
    %519 = vmatpush1.msra.mxu0 0.0
    %520 = vmatprep.subr.mxu0 0.0
    %521 = vmatpush1.msra.mxu0 0.0
    %522 = vmatprep.subr.mxu0 0.0
    %523 = vmatpush1.msra.mxu0 0.0
    %524 = vmatprep.subr.mxu0 0.0
    %525 = vmatpush1.msra.mxu0 0.0
    %526 = vmatprep.subr.mxu0 0.0
    %527 = vmatpush1.msra.mxu0 0.0
    %528 = vmatprep.subr.mxu0 0.0
    %529 = vmatpush1.msra.mxu0 0.0
    %530 = vmatprep.subr.mxu0 0.0
    %531 = vmatpush1.msra.mxu0 0.0
    %532 = vmatprep.subr.mxu0 0.0
    %533 = vmatpush1.msra.mxu0 %v85
    %534 = vmatprep.subr.mxu0 0.0
    %535 = vmatpush1.msra.mxu0 %v84
    %536 = vmatprep.subr.mxu0 0.0
    %537 = vmatpush1.msra.mxu0 %v83
    %538 = vmatprep.subr.mxu0 0.0
    %539 = vmatpush1.msra.mxu0 %v82
    %540 = vmatprep.subr.mxu0 0.0
    %541 = vmatpush2.msra.mxu0 0.0
    %542 = vmatprep.subr.mxu0 0.0
    %543 = vmatpush2.msra.mxu0 0.0
    %544 = vmatprep.subr.mxu0 0.0
    %545 = vmatpush2.msra.mxu0 0.0
    %546 = vmatprep.subr.mxu0 0.0
    %547 = vmatpush2.msra.mxu0 0.0
    %548 = vmatprep.subr.mxu0 0.0
    %549 = vmatpush2.msra.mxu0 0.0
    %550 = vmatprep.subr.mxu0 0.0
    %551 = vmatpush2.msra.mxu0 0.0
    %552 = vmatprep.subr.mxu0 0.0
    %553 = vmatpush2.msra.mxu0 0.0
    %554 = vmatprep.subr.mxu0 0.0
    %555 = vmatpush2.msra.mxu0 0.0
    %556 = vmatprep.subr.mxu0 0.0
    %557 = vmatpush2.msra.mxu0 0.0
    %558 = vmatprep.subr.mxu0 0.0
    %559 = vmatpush2.msra.mxu0 0.0
    %560 = vmatprep.subr.mxu0 0.0
    %561 = vmatpush2.msra.mxu0 0.0
    %562 = vmatprep.subr.mxu0 0.0
    %563 = vmatpush2.msra.mxu0 0.0
    %564 = vmatprep.subr.mxu0 0.0
    %565 = vmatpush2.msra.mxu0 0.0
    %566 = vmatprep.subr.mxu0 0.0
    %567 = vmatpush2.msra.mxu0 0.0
    %568 = vmatprep.subr.mxu0 0.0
    %569 = vmatpush2.msra.mxu0 0.0
    %570 = vmatprep.subr.mxu0 0.0
    %571 = vmatpush2.msra.mxu0 0.0
    %572 = vmatprep.mubr.f32.mxu0 0.0
    %573 = vmatmul.mubr.f32.gmra.mxu0 %v413
    %v574 = vpop.f32.mrf.mxu0
    %v575 = vadd.f32 %v254, %v574
    %v576 = vpop.f32.mrf.mxu0
    %577 = vmatprep.mubr.f32.mxu0 0.0
    %578 = vmatmul.mubr.f32.gmra.mxu0 %v416
    %v579 = vpop.f32.mrf.mxu0
    %v580 = vadd.f32 %v259, %v579
    %v581 = vpop.f32.mrf.mxu0
    %582 = vmatprep.mubr.f32.mxu0 0.0
    %583 = vmatmul.mubr.f32.gmra.mxu0 %v419
    %v584 = vpop.f32.mrf.mxu0
    %v585 = vadd.f32 %v264, %v584
    %v586 = vpop.f32.mrf.mxu0
    %587 = vmatprep.mubr.f32.mxu0 0.0
    %588 = vmatmul.mubr.f32.gmra.mxu0 %v422
    %v589 = vpop.f32.mrf.mxu0
    %v590 = vadd.f32 %v269, %v589
    %v591 = vpop.f32.mrf.mxu0
    %592 = vmatprep.mubr.f32.mxu0 0.0
    %593 = vmatmul.mubr.f32.gmra.mxu0 %v425
    %v594 = vpop.f32.mrf.mxu0
    %v595 = vadd.f32 %v274, %v594
    %v596 = vpop.f32.mrf.mxu0
    %597 = vmatprep.mubr.f32.mxu0 0.0
    %598 = vmatmul.mubr.f32.gmra.mxu0 %v428
    %v599 = vpop.f32.mrf.mxu0
    %v600 = vadd.f32 %v279, %v599
    %v601 = vpop.f32.mrf.mxu0
    %602 = vmatprep.mubr.f32.mxu0 0.0
    %603 = vmatmul.mubr.f32.gmra.mxu0 %v431
    %v604 = vpop.f32.mrf.mxu0
    %v605 = vadd.f32 %v284, %v604
    %v606 = vpop.f32.mrf.mxu0
    %607 = vmatprep.mubr.f32.mxu0 0.0
    %608 = vmatmul.mubr.f32.gmra.mxu0 %v434
    %v609 = vpop.f32.mrf.mxu0
    %v610 = vadd.f32 %v289, %v609
    %v611 = vpop.f32.mrf.mxu0
    %612 = vmatprep.mubr.f32.mxu0 0.0
    %613 = vmatmul.mubr.f32.gmra.mxu0 %v437
    %v614 = vpop.f32.mrf.mxu0
    %v615 = vadd.f32 %v294, %v614
    %v616 = vpop.f32.mrf.mxu0
    %617 = vmatprep.mubr.f32.mxu0 0.0
    %618 = vmatmul.mubr.f32.gmra.mxu0 %v440
    %v619 = vpop.f32.mrf.mxu0
    %v620 = vadd.f32 %v299, %v619
    %v621 = vpop.f32.mrf.mxu0
    %622 = vmatprep.mubr.f32.mxu0 0.0
    %623 = vmatmul.mubr.f32.gmra.mxu0 %v443
    %v624 = vpop.f32.mrf.mxu0
    %v625 = vadd.f32 %v304, %v624
    %v626 = vpop.f32.mrf.mxu0
    %627 = vmatprep.mubr.f32.mxu0 0.0
    %628 = vmatmul.mubr.f32.gmra.mxu0 %v446
    %v629 = vpop.f32.mrf.mxu0
    %v630 = vadd.f32 %v309, %v629
    %v631 = vpop.f32.mrf.mxu0
    %632 = vmatprep.mubr.f32.mxu0 0.0
    %633 = vmatmul.mubr.f32.gmra.mxu0 %v449
    %v634 = vpop.f32.mrf.mxu0
    %v635 = vadd.f32 %v314, %v634
    %v636 = vpop.f32.mrf.mxu0
    %637 = vmatprep.mubr.f32.mxu0 0.0
    %638 = vmatmul.mubr.f32.gmra.mxu0 %v452
    %v639 = vpop.f32.mrf.mxu0
    %v640 = vadd.f32 %v319, %v639
    %v641 = vpop.f32.mrf.mxu0
    %642 = vmatprep.mubr.f32.mxu0 0.0
    %643 = vmatmul.mubr.f32.gmra.mxu0 %v455
    %v644 = vpop.f32.mrf.mxu0
    %v645 = vadd.f32 %v324, %v644
    %v646 = vpop.f32.mrf.mxu0
    %647 = vmatprep.mubr.f32.mxu0 0.0
    %648 = vmatmul.mubr.f32.gmra.mxu0 %v458
    %v649 = vpop.f32.mrf.mxu0
    %v650 = vadd.f32 %v329, %v649
    %v651 = vpop.f32.mrf.mxu0
    %652 = vmatprep.mubr.f32.mxu0 0.0
    %653 = vmatmul.mubr.f32.gmra.mxu0 %v461
    %v654 = vpop.f32.mrf.mxu0
    %v655 = vadd.f32 %v334, %v654
    %v656 = vpop.f32.mrf.mxu0
    %657 = vmatprep.mubr.f32.mxu0 0.0
    %658 = vmatmul.mubr.f32.gmra.mxu0 %v464
    %v659 = vpop.f32.mrf.mxu0
    %v660 = vadd.f32 %v339, %v659
    %v661 = vpop.f32.mrf.mxu0
    %662 = vmatprep.mubr.f32.mxu0 0.0
    %663 = vmatmul.mubr.f32.gmra.mxu0 %v467
    %v664 = vpop.f32.mrf.mxu0
    %v665 = vadd.f32 %v344, %v664
    %v666 = vpop.f32.mrf.mxu0
    %667 = vmatprep.mubr.f32.mxu0 0.0
    %668 = vmatmul.mubr.f32.gmra.mxu0 %v470
    %v669 = vpop.f32.mrf.mxu0
    %v670 = vadd.f32 %v349, %v669
    %v671 = vpop.f32.mrf.mxu0
    %672 = vmatprep.mubr.f32.mxu0 0.0
    %673 = vmatmul.mubr.f32.gmra.mxu0 %v473
    %v674 = vpop.f32.mrf.mxu0
    %v675 = vadd.f32 %v354, %v674
    %v676 = vpop.f32.mrf.mxu0
    %677 = vmatprep.mubr.f32.mxu0 0.0
    %678 = vmatmul.mubr.f32.gmra.mxu0 %v476
    %v679 = vpop.f32.mrf.mxu0
    %v680 = vadd.f32 %v359, %v679
    %v681 = vpop.f32.mrf.mxu0
    %682 = vmatprep.mubr.f32.mxu0 0.0
    %683 = vmatmul.mubr.f32.gmra.mxu0 %v479
    %v684 = vpop.f32.mrf.mxu0
    %v685 = vadd.f32 %v364, %v684
    %v686 = vpop.f32.mrf.mxu0
    %687 = vmatprep.mubr.f32.mxu0 0.0
    %688 = vmatmul.mubr.f32.gmra.mxu0 %v482
    %v689 = vpop.f32.mrf.mxu0
    %v690 = vadd.f32 %v369, %v689
    %v691 = vpop.f32.mrf.mxu0
    %692 = vmatprep.mubr.f32.mxu0 0.0
    %693 = vmatmul.mubr.f32.gmra.mxu0 %v485
    %v694 = vpop.f32.mrf.mxu0
    %v695 = vadd.f32 %v374, %v694
    %v696 = vpop.f32.mrf.mxu0
    %697 = vmatprep.mubr.f32.mxu0 0.0
    %698 = vmatmul.mubr.f32.gmra.mxu0 %v488
    %v699 = vpop.f32.mrf.mxu0
    %v700 = vadd.f32 %v379, %v699
    %v701 = vpop.f32.mrf.mxu0
    %702 = vmatprep.mubr.f32.mxu0 0.0
    %703 = vmatmul.mubr.f32.gmra.mxu0 %v491
    %v704 = vpop.f32.mrf.mxu0
    %v705 = vadd.f32 %v384, %v704
    %v706 = vpop.f32.mrf.mxu0
    %707 = vmatprep.mubr.f32.mxu0 0.0
    %708 = vmatmul.mubr.f32.gmra.mxu0 %v494
    %v709 = vpop.f32.mrf.mxu0
    %v710 = vadd.f32 %v389, %v709
    %v711 = vpop.f32.mrf.mxu0
    %712 = vmatprep.mubr.f32.mxu0 0.0
    %713 = vmatmul.mubr.f32.gmra.mxu0 %v497
    %v714 = vpop.f32.mrf.mxu0
    %v715 = vadd.f32 %v394, %v714
    %v716 = vpop.f32.mrf.mxu0
    %717 = vmatprep.mubr.f32.mxu0 0.0
    %718 = vmatmul.mubr.f32.gmra.mxu0 %v500
    %v719 = vpop.f32.mrf.mxu0
    %v720 = vadd.f32 %v399, %v719
    %v721 = vpop.f32.mrf.mxu0
    %722 = vmatprep.mubr.f32.mxu0 0.0
    %723 = vmatmul.mubr.f32.gmra.mxu0 %v503
    %v724 = vpop.f32.mrf.mxu0
    %v725 = vadd.f32 %v404, %v724
    %v726 = vpop.f32.mrf.mxu0
    %727 = vmatprep.mubr.f32.mxu0 0.0
    %728 = vmatmul.mubr.f32.gmra.mxu0 %v506
    %v729 = vpop.f32.mrf.mxu0
    %v730 = vadd.f32 %v409, %v729
    %v731 = vpop.f32.mrf.mxu0
    %732 = vdwg.mxu0
    %v733 = vld [vmem:[%s3] sm:$0x1]
    %v735 = vlaneseq
    %v736 = vshrl.u32 %v735, 7
    %v737 = vsub.s32 0, %v736
    %v738 = vrot.slane %v733, %v737
    %v740 = vadd.f32 %v575, %v738
    %v741 = vadd.f32 %v580, %v738
    %v742 = vadd.f32 %v585, %v738
    %v743 = vadd.f32 %v590, %v738
    %v744 = vadd.f32 %v595, %v738
    %v745 = vadd.f32 %v600, %v738
    %v746 = vadd.f32 %v605, %v738
    %v747 = vadd.f32 %v610, %v738
    %v748 = vadd.f32 %v615, %v738
    %v749 = vadd.f32 %v620, %v738
    %v750 = vadd.f32 %v625, %v738
    %v751 = vadd.f32 %v630, %v738
    %v752 = vadd.f32 %v635, %v738
    %v753 = vadd.f32 %v640, %v738
    %v754 = vadd.f32 %v645, %v738
    %v755 = vadd.f32 %v650, %v738
    %v756 = vadd.f32 %v655, %v738
    %v757 = vadd.f32 %v660, %v738
    %v758 = vadd.f32 %v665, %v738
    %v759 = vadd.f32 %v670, %v738
    %v760 = vadd.f32 %v675, %v738
    %v761 = vadd.f32 %v680, %v738
    %v762 = vadd.f32 %v685, %v738
    %v763 = vadd.f32 %v690, %v738
    %v764 = vadd.f32 %v695, %v738
    %v765 = vadd.f32 %v700, %v738
    %v766 = vadd.f32 %v705, %v738
    %v767 = vadd.f32 %v710, %v738
    %v768 = vadd.f32 %v715, %v738
    %v769 = vadd.f32 %v720, %v738
    %v770 = vadd.f32 %v725, %v738
    %v771 = vadd.f32 %v730, %v738
    %772 = vst [vmem:[#allocation2] sm:$0xff] %v740
    %773 = vst [vmem:[#allocation2 + $0x8] sm:$0xff] %v741
    %774 = vst [vmem:[#allocation2 + $0x10] sm:$0xff] %v742
    %775 = vst [vmem:[#allocation2 + $0x18] sm:$0xff] %v743
    %776 = vst [vmem:[#allocation2 + $0x20] sm:$0xff] %v744
    %777 = vst [vmem:[#allocation2 + $0x28] sm:$0xff] %v745
    %778 = vst [vmem:[#allocation2 + $0x30] sm:$0xff] %v746
    %779 = vst [vmem:[#allocation2 + $0x38] sm:$0xff] %v747
    %780 = vst [vmem:[#allocation2 + $0x40] sm:$0xff] %v748
    %781 = vst [vmem:[#allocation2 + $0x48] sm:$0xff] %v749
    %782 = vst [vmem:[#allocation2 + $0x50] sm:$0xff] %v750
    %783 = vst [vmem:[#allocation2 + $0x58] sm:$0xff] %v751
    %784 = vst [vmem:[#allocation2 + $0x60] sm:$0xff] %v752
    %785 = vst [vmem:[#allocation2 + $0x68] sm:$0xff] %v753
    %786 = vst [vmem:[#allocation2 + $0x70] sm:$0xff] %v754
    %787 = vst [vmem:[#allocation2 + $0x78] sm:$0xff] %v755
    %788 = vst [vmem:[#allocation2 + $0x80] sm:$0xff] %v756
    %789 = vst [vmem:[#allocation2 + $0x88] sm:$0xff] %v757
    %790 = vst [vmem:[#allocation2 + $0x90] sm:$0xff] %v758
    %791 = vst [vmem:[#allocation2 + $0x98] sm:$0xff] %v759
    %792 = vst [vmem:[#allocation2 + $0xa0] sm:$0xff] %v760
    %793 = vst [vmem:[#allocation2 + $0xa8] sm:$0xff] %v761
    %794 = vst [vmem:[#allocation2 + $0xb0] sm:$0xff] %v762
    %795 = vst [vmem:[#allocation2 + $0xb8] sm:$0xff] %v763
    %796 = vst [vmem:[#allocation2 + $0xc0] sm:$0xff] %v764
    %797 = vst [vmem:[#allocation2 + $0xc8] sm:$0xff] %v765
    %798 = vst [vmem:[#allocation2 + $0xd0] sm:$0xff] %v766
    %799 = vst [vmem:[#allocation2 + $0xd8] sm:$0xff] %v767
    %800 = vst [vmem:[#allocation2 + $0xe0] sm:$0xff] %v768
    %801 = vst [vmem:[#allocation2 + $0xe8] sm:$0xff] %v769
    %802 = vst [vmem:[#allocation2 + $0xf0] sm:$0xff] %v770
    %803 = vst [vmem:[#allocation2 + $0xf8] sm:$0xff] %v771
    // Predicated region
    $region18: #{tpu_custom_call.1} parent=1 // pred_check
      _
    $region19: #{tpu_custom_call.1} parent=1 // pred_check_branch
      %805 = sbr.rel (0) target = $region21
    $region20: #{tpu_custom_call.1} parent=1 // pred_region
      %s807 = ssub.s32 4096, 4096
      %808 = vsyncadd [#allocation3], %s807
      %s809 = sshll.u32 [#allocation2], 4
      %s810 = int_to_ptr.vmem [resolvable:$true] %s809
      %815 = dma.vmem_to_hbm [thread:$0]  %s810, 4096, %s4, [#allocation3], 128, 128, 8
    $region21: #{tpu_custom_call.1} parent=1 // pred_fallthru
      _
    // Predicated region
    $region22: #{tpu_custom_call.1} parent=1 // pred_check
      _
    $region23: #{tpu_custom_call.1} parent=1 // pred_check_branch
      %817 = sbr.rel (0) target = $region25
    $region24: #{tpu_custom_call.1} parent=1 // pred_region
      %818 = dma.done [#allocation3], 4096
    $region25: #{tpu_custom_call.1} parent=1 // pred_fallthru
      _
    %819 = vsyncpa [#allocation3], 1

</llo_original>
